<compile_context>
chip_gen: v7x
topology: tpu7x:2x2x1
jax: 0.10.0
libtpu: 0.0.40
codegen_flags: <defaults>
</compile_context>

<pallas_src>
import functools

import jax
import jax.numpy as jnp
from jax.experimental import pallas as pl
from jax.experimental.pallas import tpu as pltpu

LANE = 128     # TPU lane width (last dim)
SUBLANE = 8    # TPU sublane width (second-to-last dim)


def _round_up(n, m):
    return ((n + m - 1) // m) * m


def _pick_row_tile(R, max_tile=2048):
    """Row tile: <= max_tile rows, >= 2 grid blocks (v7x megacore), 8-aligned."""
    r8 = _round_up(max(R, SUBLANE), SUBLANE)
    n_tiles = max(2, -(-r8 // max_tile))        # ceil-div, at least 2 tiles
    return _round_up(-(-r8 // n_tiles), SUBLANE)


# ----------------------------- fused Pallas kernel -------------------------- #

def _fused_forward_kernel(x_ref, wp_ref, w1_ref, w2_ref, o_ref):
    cdt = wp_ref.dtype
    # Stage 1: all per-modality projections as ONE block-diagonal matmul.
    #   x rows carry each modality's features in its own column range plus a
    #   constant-1 indicator column, so ReLU(x @ Wp) == per-modality
    #   ReLU(x_mod @ W_mod + b_mod).  The indicator also drives a constant-1
    #   hidden lane (BIAS_COL) that carries enc_b1 / enc_b2 through the MLP.
    h = jnp.dot(x_ref[...], wp_ref[...], preferred_element_type=jnp.float32)
    h = jnp.maximum(h, 0.0)
    # Stage 2: encoder layer 1 (Linear + ReLU); bias comes via the BIAS_COL lane.
    h = jnp.dot(h.astype(cdt), w1_ref[...], preferred_element_type=jnp.float32)
    h = jnp.maximum(h, 0.0)
    # Stage 3: encoder layer 2 (Linear, no activation) -> lane-dense output.
    o_ref[...] = jnp.dot(h.astype(cdt), w2_ref[...],
                         preferred_element_type=jnp.float32).astype(o_ref.dtype)


@functools.partial(jax.jit, static_argnames=("tm",))
def _fused_forward(x2d, wp, w1, w2, *, tm):
    R_pad, D_packed = x2d.shape
    H_pad = w1.shape[0]
    L_pad = w2.shape[1]
    grid = (R_pad // tm,)
    itemsize = jnp.dtype(x2d.dtype).itemsize

    flops = 2 * R_pad * (D_packed * H_pad + H_pad * H_pad + H_pad * L_pad)
    bytes_accessed = itemsize * (R_pad * D_packed + D_packed * H_pad
                                 + H_pad * H_pad + H_pad * L_pad
                                 + R_pad * L_pad)

    return pl.pallas_call(
        _fused_forward_kernel,
        out_shape=jax.ShapeDtypeStruct((R_pad, L_pad), x2d.dtype),
        grid_spec=pltpu.PrefetchScalarGridSpec(
            num_scalar_prefetch=0,
            grid=grid,
            in_specs=[
                # activations: row-tiled, streamed / double-buffered.
                # last block dim == full array dim, so the narrow (non-128)
                # feature width is legal and reads stay contiguous.
                pl.BlockSpec((tm, D_packed), lambda i: (i, 0)),
                # weights: constant index_map -> VMEM-resident across the grid
                pl.BlockSpec((D_packed, H_pad), lambda i: (0, 0)),
                pl.BlockSpec((H_pad, H_pad), lambda i: (0, 0)),
                pl.BlockSpec((H_pad, L_pad), lambda i: (0, 0)),
            ],
            out_specs=pl.BlockSpec((tm, L_pad), lambda i: (i, 0)),
        ),
        compiler_params=pltpu.CompilerParams(
            dimension_semantics=("parallel",)),
        cost_estimate=pl.CostEstimate(flops=flops, transcendentals=0,
                                      bytes_accessed=bytes_accessed),
    )(x2d, wp, w1, w2)


# ------------------------------ MSA module ---------------------------------- #

class MarkovStateAbstractionPallas:
    """forward(x) == encode(x) of the PyTorch module, for a single dict input."""

    def __init__(self, config, key, compute_dtype=jnp.float32):
        self.config = config
        self.order = [name for name, _ in config["input_dims"]]
        self.n_hidden = config["n_hidden"]
        self.n_latent = config["n_latent"]
        self.compute_dtype = compute_dtype
        assert config["n_layers"] == 2, "script instantiates the 2-layer encoder"

        keys = jax.random.split(key, 2 * len(config["input_dims"]) + 4)
        ki = iter(range(len(keys)))

        # enc_proj[mod]: Linear(D_mod, n_hidden) stored as W:[D_mod, H], b:[H]
        self.enc_proj = {}
        for name, dim in config["input_dims"]:
            w = jax.random.normal(keys[next(ki)], (dim, self.n_hidden), jnp.float32) * 0.05
            b = jax.random.normal(keys[next(ki)], (self.n_hidden,), jnp.float32) * 0.01
            self.enc_proj[name] = (w, b)

        # encoder: Linear(H, H) + ReLU, Linear(H, L)
        self.enc_w1 = jax.random.normal(keys[next(ki)], (self.n_hidden, self.n_hidden), jnp.float32) * 0.05
        self.enc_b1 = jax.random.normal(keys[next(ki)], (self.n_hidden,), jnp.float32) * 0.01
        self.enc_w2 = jax.random.normal(keys[next(ki)], (self.n_hidden, self.n_latent), jnp.float32) * 0.05
        self.enc_b2 = jax.random.normal(keys[next(ki)], (self.n_latent,), jnp.float32) * 0.01

        # ---- pre-packed weights for the fused kernel -------------------------
        dims = [d for _, d in config["input_dims"]]
        n_mod = len(dims)
        self._n_mod = n_mod
        self._bias_base = sum(dims)                      # indicator columns start here
        # True packed activation width (features + per-modality indicators),
        # only 8-aligned -- NOT padded to 128 lanes.
        self.D_packed = _round_up(self._bias_base + n_mod, SUBLANE)
        # Reserve one padding lane (BIAS_COL) to carry a constant 1 through the MLP.
        self.H_pad = _round_up(self.n_hidden + 1, LANE)
        self.L_pad = _round_up(self.n_latent, LANE)
        bias_col = self.n_hidden                         # first padding lane of H

        wp = jnp.zeros((self.D_packed, self.H_pad), jnp.float32)
        self._col_off = {}
        col = 0
        for idx, (name, d) in enumerate(config["input_dims"]):
            w, b = self.enc_proj[name]
            wp = wp.at[col:col + d, :self.n_hidden].set(w)
            wp = wp.at[self._bias_base + idx, :self.n_hidden].set(b)
            wp = wp.at[self._bias_base + idx, bias_col].set(1.0)   # drive constant-1 lane
            self._col_off[name] = col
            col += d

        w1p = jnp.zeros((self.H_pad, self.H_pad), jnp.float32)
        w1p = w1p.at[:self.n_hidden, :self.n_hidden].set(self.enc_w1)
        w1p = w1p.at[bias_col, :self.n_hidden].set(self.enc_b1)     # folded enc_b1
        w1p = w1p.at[bias_col, bias_col].set(1.0)                   # keep the 1 alive

        w2p = jnp.zeros((self.H_pad, self.L_pad), jnp.float32)
        w2p = w2p.at[:self.n_hidden, :self.n_latent].set(self.enc_w2)
        w2p = w2p.at[bias_col, :self.n_latent].set(self.enc_b2)     # folded enc_b2

        self.wp = wp.astype(compute_dtype)
        self.w1p = w1p.astype(compute_dtype)
        self.w2p = w2p.astype(compute_dtype)

        # TODO(synk): pre_attention / attention / context / inverse_fc / density_fc /
        # decoder / dec_proj / mi are only used by the training losses, not by
        # forward(); they are intentionally not instantiated here.

    # --- pack all modalities into one narrow block-diagonal token matrix ----- #
    def _pack_tokens(self, x, dtype):
        pieces = []
        for idx, name in enumerate(self.order):
            xi = x[name].astype(dtype)                               # [B, T, D]
            D = xi.shape[-1]
            off = self._col_off[name]
            xi = jnp.pad(xi, ((0, 0), (0, 0), (off, self.D_packed - off - D)))
            xi = xi.at[:, :, self._bias_base + idx].set(jnp.asarray(1.0, dtype))
            pieces.append(xi)
        return jnp.concatenate(pieces, axis=1)                       # [B, T_tot, D_packed]

    def forward(self, x):
        dtype = self.compute_dtype
        x_cat = self._pack_tokens(x, dtype)
        B, T_total, _ = x_cat.shape

        R = B * T_total
        tm = _pick_row_tile(R)
        R_pad = _round_up(R, tm)
        x2d = x_cat.reshape(R, self.D_packed)
        if R_pad != R:
            x2d = jnp.pad(x2d, ((0, R_pad - R), (0, 0)))

        out = _fused_forward(x2d, self.wp, self.w1p, self.w2p, tm=tm)  # [R_pad, L_pad]
        # TODO(synk): if the downstream consumer can take the padded (R_pad, L_pad)
        # slab, drop this slice/reshape to save one extra HBM pass on the output.
        return out[:R, :self.n_latent].reshape(B, T_total, self.n_latent)

    # pure-JAX reference for verification
    def forward_ref(self, x):
        projs = []
        for mod in self.order:
            w, b = self.enc_proj[mod]
            projs.append(jax.nn.relu(x[mod] @ w + b))
        projs = jnp.concatenate(projs, axis=1)
        h = jax.nn.relu(projs @ self.enc_w1 + self.enc_b1)
        return h @ self.enc_w2 + self.enc_b2


# --------------------------------- main -------------------------------------- #

if __name__ == "__main__":
    config = {
        "input_dims": [("objects", 12), ("global", 8)],
        "n_hidden": 32,
        "n_latent": 16,
        "n_layers": 2,
        "action_classification_type": "softmax",
        "action_dim": 4,
    }

    key = jax.random.PRNGKey(0)
    k_params, k_obj, k_glob = jax.random.split(key, 3)

    msa = MarkovStateAbstractionPallas(config, k_params)  # f32 for the exactness check

    B = 2
    x = {
        "objects": jax.random.normal(k_obj, (B, 6, 12), jnp.float32),
        "global": jax.random.normal(k_glob, (B, 2, 8), jnp.float32),
    }

    out = msa.forward(x)
    out = jax.block_until_ready(out)

    ref = jax.block_until_ready(msa.forward_ref(x))
    assert out.shape == (B, 8, config["n_latent"]), out.shape
    assert jnp.allclose(out, ref, atol=1e-5, rtol=1e-5), "mismatch vs JAX reference"

    print("KERNEL_OK")
</pallas_src>

<mosaic_0001>
module attributes {stable_mosaic.version = 11 : i64} {
  func.func @_fused_forward_kernel(%arg0: i32, %arg1: memref<8x24xf32, #tpu.memory_space<vmem>>, %arg2: memref<24x128xf32, #tpu.memory_space<vmem>>, %arg3: memref<128x128xf32, #tpu.memory_space<vmem>>, %arg4: memref<128x128xf32, #tpu.memory_space<vmem>>, %arg5: memref<8x128xf32, #tpu.memory_space<vmem>>) attributes {dimension_semantics = [#tpu.dimension_semantics<parallel>], iteration_bounds = array<i64: 2>, scalar_prefetch = 0 : i64, scratch_operands = 0 : i64, tpu.core_type = #tpu.core_type<tc>, window_params = [{transform_indices = @transform_0, window_bounds = array<i64: 8, 24>}, {pipeline_mode = #tpu.pipeline_mode<synchronous>, transform_indices = @transform_1, window_bounds = array<i64: 24, 128>}, {pipeline_mode = #tpu.pipeline_mode<synchronous>, transform_indices = @transform_2, window_bounds = array<i64: 128, 128>}, {pipeline_mode = #tpu.pipeline_mode<synchronous>, transform_indices = @transform_3, window_bounds = array<i64: 128, 128>}, {transform_indices = @transform_4, window_bounds = array<i64: 8, 128>}]} {
    %c0 = arith.constant 0 : index
    %c0_0 = arith.constant 0 : index
    %0 = vector.load %arg1[%c0, %c0_0] : memref<8x24xf32, #tpu.memory_space<vmem>>, vector<8x24xf32>
    %c0_1 = arith.constant 0 : index
    %c0_2 = arith.constant 0 : index
    %1 = vector.load %arg2[%c0_1, %c0_2] : memref<24x128xf32, #tpu.memory_space<vmem>>, vector<24x128xf32>
    %cst = arith.constant dense<0.000000e+00> : vector<8x128xf32>
    %2 = tpu.matmul %0, %1, %cst {dimension_numbers = #tpu.dot_dimension_numbers<[1], [0], [0], [1], [0, 0, 1, 1], [], []>} : vector<8x24xf32>, vector<24x128xf32>, vector<8x128xf32> -> vector<8x128xf32>
    %cst_3 = arith.constant 0.000000e+00 : f32
    %3 = vector.broadcast %cst_3 : f32 to vector<8x128xf32>
    %4 = arith.maximumf %2, %3 : vector<8x128xf32>
    %c0_4 = arith.constant 0 : index
    %c0_5 = arith.constant 0 : index
    %5 = vector.load %arg3[%c0_4, %c0_5] : memref<128x128xf32, #tpu.memory_space<vmem>>, vector<128x128xf32>
    %cst_6 = arith.constant dense<0.000000e+00> : vector<8x128xf32>
    %6 = tpu.matmul %4, %5, %cst_6 {dimension_numbers = #tpu.dot_dimension_numbers<[1], [0], [0], [1], [0, 0, 1, 1], [], []>} : vector<8x128xf32>, vector<128x128xf32>, vector<8x128xf32> -> vector<8x128xf32>
    %cst_7 = arith.constant 0.000000e+00 : f32
    %7 = vector.broadcast %cst_7 : f32 to vector<8x128xf32>
    %8 = arith.maximumf %6, %7 : vector<8x128xf32>
    %c0_8 = arith.constant 0 : index
    %c0_9 = arith.constant 0 : index
    %9 = vector.load %arg4[%c0_8, %c0_9] : memref<128x128xf32, #tpu.memory_space<vmem>>, vector<128x128xf32>
    %cst_10 = arith.constant dense<0.000000e+00> : vector<8x128xf32>
    %10 = tpu.matmul %8, %9, %cst_10 {dimension_numbers = #tpu.dot_dimension_numbers<[1], [0], [0], [1], [0, 0, 1, 1], [], []>} : vector<8x128xf32>, vector<128x128xf32>, vector<8x128xf32> -> vector<8x128xf32>
    %c0_11 = arith.constant 0 : index
    %c0_12 = arith.constant 0 : index
    %11 = vector.load %arg5[%c0_11, %c0_12] : memref<8x128xf32, #tpu.memory_space<vmem>>, vector<8x128xf32>
    tpu.vector_store %arg5[%c0_11, %c0_12], %10 {strides = array<i32>} : memref<8x128xf32, #tpu.memory_space<vmem>>, vector<8x128xf32>,
    return
  }
  func.func @transform_0(%arg0: i32) -> (i32, i32) {
    %c0_i32 = arith.constant 0 : i32
    %c0_i32_0 = arith.constant 0 : i32
    return %arg0, %c0_i32 : i32, i32
  }
  func.func @transform_1(%arg0: i32) -> (i32, i32) {
    %c0_i32 = arith.constant 0 : i32
    %c0_i32_0 = arith.constant 0 : i32
    %c0_i32_1 = arith.constant 0 : i32
    return %c0_i32, %c0_i32_0 : i32, i32
  }
  func.func @transform_2(%arg0: i32) -> (i32, i32) {
    %c0_i32 = arith.constant 0 : i32
    %c0_i32_0 = arith.constant 0 : i32
    %c0_i32_1 = arith.constant 0 : i32
    return %c0_i32, %c0_i32_0 : i32, i32
  }
  func.func @transform_3(%arg0: i32) -> (i32, i32) {
    %c0_i32 = arith.constant 0 : i32
    %c0_i32_0 = arith.constant 0 : i32
    %c0_i32_1 = arith.constant 0 : i32
    return %c0_i32, %c0_i32_0 : i32, i32
  }
  func.func @transform_4(%arg0: i32) -> (i32, i32) {
    %c0_i32 = arith.constant 0 : i32
    %c0_i32_0 = arith.constant 0 : i32
    return %arg0, %c0_i32 : i32, i32
  }
}

</mosaic_0001>

<llo_original>
// kernel: _fused_forward.1
$region0: #{_fused_forward.1}
  #allocation0 [shape = 'u32[]', space=smem, size = 0x4, offset = 0x4, fixed_abs, tag = 'smem constant byte address 0x4 - core index']
  #allocation1 [shape = 'u32[144,128]{1,0:T(1,128)}', space=vmem, size = 0x12000, scoped, tag = 'internal scratch']
  %s0 = inlined_call_operand.hbm [shape: f32[16,24], index: 0, kind: input, shape index: {}]
  %s1 = inlined_call_operand.hbm [shape: f32[24,128], index: 1, kind: input, shape index: {}]
  %s2 = inlined_call_operand.hbm [shape: f32[128,128], index: 2, kind: input, shape index: {}]
  %s3 = inlined_call_operand.hbm [shape: f32[128,128], index: 3, kind: input, shape index: {}]
  %s4 = inlined_call_operand.hbm [shape: f32[16,128], index: 4, kind: output, shape index: {}]
  %s5 = sld [smem:[#allocation0]]
  $region65: #{_fused_forward.1} parent=0
    _
  %s7 = ssub.s32 1, %s5
  %s8 = scalar_select 0, %s7, %s5
  $region1: #{_fused_forward.1} parent=0
    #allocation2 [shape = 'u8[8192]{0}', space=vmem, size = 0x2000, scoped, tag = 'input window, operand 0']
    #allocation3 [shape = 's32[2]{0}', space=sflag, size = 0x8, scoped, tag = 'scoped memory for _fused_forward.1']
    #allocation4 [shape = 's32[2]{0}', space=sflag, size = 0x8, scoped, tag = 'scoped memory for _fused_forward.1']
    #allocation5 [shape = 'u8[12288]{0}', space=vmem, size = 0x3000, scoped, tag = 'input window, operand 1, single buffered']
    #allocation6 [shape = 's32[1]{0}', space=sflag, size = 0x4, scoped, tag = 'scoped memory for _fused_forward.1']
    #allocation7 [shape = 'u8[65536]{0}', space=vmem, size = 0x10000, scoped, tag = 'input window, operand 2, single buffered']
    #allocation8 [shape = 'u8[65536]{0}', space=vmem, size = 0x10000, scoped, tag = 'input window, operand 3, single buffered']
    #allocation9 [shape = 's32[1]{0}', space=sflag, size = 0x4, scoped, tag = 'scoped memory for _fused_forward.1']
    #allocation10 [shape = 'u8[8192]{0}', space=vmem, size = 0x2000, scoped, tag = 'output window, operand 0']
    %9 = vsyncpa [#allocation3], 0
    %s10 = scalar_lea.sflag [#allocation3], 1
    %11 = vsyncpa %s10, 0
    %12 = vsyncpa [#allocation6], 0
    %13 = vsyncpa [#allocation9], 0
    %14 = vsyncpa [#allocation4], 0
    %s15 = scalar_lea.sflag [#allocation4], 1
    %16 = vsyncpa %s15, 0
    loop: start=0, step=1, limit=4
    $region2: #{_fused_forward.1} parent=1 // loop_pre_header
      _
    $region3: #{_fused_forward.1} parent=1 // loop_header
      %s18 = sphi 0, %s22
      %p19 = scmp.ge.s32.totalorder %s18, 4
      %s28 = sphi 0, %s30
      %s31 = sphi 0, %s28
      %s32 = sphi 0, %s31
      %s48 = sphi 0, %s32
      %s52 = sphi 0, %s52
      %s54 = sphi 0, %s52
      %s55 = sphi 0, %s54
      %s69 = sphi 0, %s55
      %s73 = sphi 0, %s73
      %s75 = sphi 0, %s73
      %s76 = sphi 0, %s75
      %s90 = sphi 0, %s76
      %s94 = sphi 0, %s94
      %s96 = sphi 0, %s94
      %s97 = sphi 0, %s96
      %s111 = sphi 0, %s97
      %s117 = sphi 0, %s119
      %s120 = sphi 0, %s117
      %s121 = sphi 0, %s120
      %s137 = sphi 0, %s121
    $region4: #{_fused_forward.1} parent=1 // loop_header_branch
      %21 = sbr.rel (%p19) target = $region8
    $region5: #{_fused_forward.1} parent=1 // loop_body
      %s23 = ssub.s32 %s18, 1
      %s24 = ssub.s32 %s18, 2
      %s25 = sadd.s32 %s18, 1
      %s26 = ssub.s32 %s18, %s25
      %p27 = scmp.eq.s32.totalorder %s26, 0
      %s29 = sadd.s32 %s28, 1
      %s30 = scalar_select %p27, %s28, %s29
      %p33 = pneg %p27
      %p34 = scmp.eq.s32.totalorder %s18, 1
      %p35 = por %p33, %p34
      %p36 = scmp.ne.s32.totalorder %s28, %s31
      %p37 = scmp.eq.s32.totalorder %s18, 0
      %p38 = por %p36, %p37
      %p39 = scmp.ne.s32.totalorder %s28, %s31
      %p40 = scmp.eq.s32.totalorder %s23, 1
      %p41 = por %p39, %p40
      %p42 = scmp.ne.s32.totalorder %s31, %s32
      %p43 = scmp.eq.s32.totalorder %s23, 0
      %p44 = por %p42, %p43
      %p45 = scmp.ne.s32.totalorder %s31, %s32
      %p46 = scmp.eq.s32.totalorder %s24, 1
      %p47 = por %p45, %p46
      %p49 = scmp.ne.s32.totalorder %s32, %s48
      %p50 = scmp.eq.s32.totalorder %s24, 0
      %p51 = por %p49, %p50
      %s53 = sadd.s32 %s52, 1
      %p56 = scmp.eq.s32.totalorder %s18, 1
      %p57 = scmp.ne.s32.totalorder %s52, %s54
      %p58 = scmp.eq.s32.totalorder %s18, 0
      %p59 = por %p57, %p58
      %p60 = scmp.ne.s32.totalorder %s52, %s54
      %p61 = scmp.eq.s32.totalorder %s23, 1
      %p62 = por %p60, %p61
      %p63 = scmp.ne.s32.totalorder %s54, %s55
      %p64 = scmp.eq.s32.totalorder %s23, 0
      %p65 = por %p63, %p64
      %p66 = scmp.ne.s32.totalorder %s54, %s55
      %p67 = scmp.eq.s32.totalorder %s24, 1
      %p68 = por %p66, %p67
      %p70 = scmp.ne.s32.totalorder %s55, %s69
      %p71 = scmp.eq.s32.totalorder %s24, 0
      %p72 = por %p70, %p71
      %s74 = sadd.s32 %s73, 1
      %p77 = scmp.eq.s32.totalorder %s18, 1
      %p78 = scmp.ne.s32.totalorder %s73, %s75
      %p79 = scmp.eq.s32.totalorder %s18, 0
      %p80 = por %p78, %p79
      %p81 = scmp.ne.s32.totalorder %s73, %s75
      %p82 = scmp.eq.s32.totalorder %s23, 1
      %p83 = por %p81, %p82
      %p84 = scmp.ne.s32.totalorder %s75, %s76
      %p85 = scmp.eq.s32.totalorder %s23, 0
      %p86 = por %p84, %p85
      %p87 = scmp.ne.s32.totalorder %s75, %s76
      %p88 = scmp.eq.s32.totalorder %s24, 1
      %p89 = por %p87, %p88
      %p91 = scmp.ne.s32.totalorder %s76, %s90
      %p92 = scmp.eq.s32.totalorder %s24, 0
      %p93 = por %p91, %p92
      %s95 = sadd.s32 %s94, 1
      %p98 = scmp.eq.s32.totalorder %s18, 1
      %p99 = scmp.ne.s32.totalorder %s94, %s96
      %p100 = scmp.eq.s32.totalorder %s18, 0
      %p101 = por %p99, %p100
      %p102 = scmp.ne.s32.totalorder %s94, %s96
      %p103 = scmp.eq.s32.totalorder %s23, 1
      %p104 = por %p102, %p103
      %p105 = scmp.ne.s32.totalorder %s96, %s97
      %p106 = scmp.eq.s32.totalorder %s23, 0
      %p107 = por %p105, %p106
      %p108 = scmp.ne.s32.totalorder %s96, %s97
      %p109 = scmp.eq.s32.totalorder %s24, 1
      %p110 = por %p108, %p109
      %p112 = scmp.ne.s32.totalorder %s97, %s111
      %p113 = scmp.eq.s32.totalorder %s24, 0
      %p114 = por %p112, %p113
      %s115 = ssub.s32 %s18, %s25
      %p116 = scmp.eq.s32.totalorder %s115, 0
      %s118 = sadd.s32 %s117, 1
      %s119 = scalar_select %p116, %s117, %s118
      %p122 = pneg %p116
      %p123 = scmp.eq.s32.totalorder %s18, 1
      %p124 = por %p122, %p123
      %p125 = scmp.ne.s32.totalorder %s117, %s120
      %p126 = scmp.eq.s32.totalorder %s18, 0
      %p127 = por %p125, %p126
      %p128 = scmp.ne.s32.totalorder %s117, %s120
      %p129 = scmp.eq.s32.totalorder %s23, 1
      %p130 = por %p128, %p129
      %p131 = scmp.ne.s32.totalorder %s120, %s121
      %p132 = scmp.eq.s32.totalorder %s23, 0
      %p133 = por %p131, %p132
      %p134 = scmp.ne.s32.totalorder %s120, %s121
      %p135 = scmp.eq.s32.totalorder %s24, 1
      %p136 = por %p134, %p135
      %p138 = scmp.ne.s32.totalorder %s121, %s137
      %p139 = scmp.eq.s32.totalorder %s24, 0
      %p140 = por %p138, %p139
      %p141 = scmp.le.s32.totalorder 1, %s18
      %p142 = scmp.lt.s32.totalorder %s18, 3
      %p143 = pnand %p141, %p142
      %p144 = pneg %p143
      // Predicated region
      $region9: #{_fused_forward.1} parent=5 // pred_check
        _
      $region10: #{_fused_forward.1} parent=5 // pred_check_branch
        %146 = sbr.rel (%p143) target = $region12
      $region11: #{_fused_forward.1} parent=5 // pred_region
        %s147 = ssub.s32 %s18, 1
        // Predicated region
        $region13: #{_fused_forward.1} parent=11 // pred_check
          %p148 = pneg %p65
        $region14: #{_fused_forward.1} parent=11 // pred_check_branch
          %150 = sbr.rel (%p148) target = $region16
        $region15: #{_fused_forward.1} parent=11 // pred_region
          %s152 = ssub.s32 384, 384
          %153 = vsyncadd [#allocation6], %s152
          %s154 = sshll.u32 [#allocation5], 4
          %s155 = int_to_ptr.vmem [resolvable:$true] %s154
          %160 = dma.hbm_to_vmem [thread:$0]  %s1, 384, %s155, [#allocation6], 128, 128, 8
        $region16: #{_fused_forward.1} parent=11 // pred_fallthru
          _
        // Predicated region
        $region17: #{_fused_forward.1} parent=11 // pred_check
          %p161 = pneg %p86
        $region18: #{_fused_forward.1} parent=11 // pred_check_branch
          %163 = sbr.rel (%p161) target = $region20
        $region19: #{_fused_forward.1} parent=11 // pred_region
          %s165 = ssub.s32 2048, 2048
          %166 = vsyncadd [#allocation6], %s165
          %s167 = sshll.u32 [#allocation7], 4
          %s168 = int_to_ptr.vmem [resolvable:$true] %s167
          %173 = dma.hbm_to_vmem [thread:$0]  %s2, 2048, %s168, [#allocation6], 128, 128, 8
        $region20: #{_fused_forward.1} parent=11 // pred_fallthru
          _
        // Predicated region
        $region21: #{_fused_forward.1} parent=11 // pred_check
          %p174 = pneg %p107
        $region22: #{_fused_forward.1} parent=11 // pred_check_branch
          %176 = sbr.rel (%p174) target = $region24
        $region23: #{_fused_forward.1} parent=11 // pred_region
          %s178 = ssub.s32 2048, 2048
          %179 = vsyncadd [#allocation9], %s178
          %s180 = sshll.u32 [#allocation8], 4
          %s181 = int_to_ptr.vmem [resolvable:$true] %s180
          %186 = dma.hbm_to_vmem [thread:$0]  %s3, 2048, %s181, [#allocation9], 128, 128, 8
        $region24: #{_fused_forward.1} parent=11 // pred_fallthru
          _
      $region12: #{_fused_forward.1} parent=5 // pred_fallthru
        _
      %p187 = scmp.lt.s32.totalorder %s18, 2
      // Predicated region
      $region25: #{_fused_forward.1} parent=5 // pred_check
        %p188 = pneg %p187
      $region26: #{_fused_forward.1} parent=5 // pred_check_branch
        %190 = sbr.rel (%p188) target = $region28
      $region27: #{_fused_forward.1} parent=5 // pred_region
        // Predicated region
        $region29: #{_fused_forward.1} parent=27 // pred_check
          %p191 = pneg %p38
        $region30: #{_fused_forward.1} parent=27 // pred_check_branch
          %193 = sbr.rel (%p191) target = $region32
        $region31: #{_fused_forward.1} parent=27 // pred_region
          %s194 = sand.u32 %s28, 1
          %s195 = scalar_lea.sflag [#allocation3], %s194
          %s196 = sand.u32 %s28, 1
          %s197 = smul.addr %s196, 8
          %s198 = scalar_lea.vmem [#allocation2], %s197
          %s200 = ssub.s32 128, 128
          %201 = vsyncadd %s195, %s200
          %s202 = smul.addr %s18, 128
          %s203 = scalar_lea.hbm %s0, %s202
          %s205 = sshll.u32 %s198, 4
          %s206 = int_to_ptr.vmem [resolvable:$true] %s205
          %208 = dma.hbm_to_vmem [thread:$0]  %s203, 128, %s206, %s195
        $region32: #{_fused_forward.1} parent=27 // pred_fallthru
          _
      $region28: #{_fused_forward.1} parent=5 // pred_fallthru
        _
      %p209 = scmp.le.s32.totalorder 1, %s18
      %p210 = scmp.lt.s32.totalorder %s18, 3
      %p211 = pnand %p209, %p210
      %p212 = pneg %p211
      // Predicated region
      $region33: #{_fused_forward.1} parent=5 // pred_check
        _
      $region34: #{_fused_forward.1} parent=5 // pred_check_branch
        %214 = sbr.rel (%p211) target = $region36
      $region35: #{_fused_forward.1} parent=5 // pred_region
        %s215 = ssub.s32 %s18, 1
        %s216 = sand.u32 %s31, 1
        %s217 = scalar_lea.sflag [#allocation3], %s216
        %s218 = sand.u32 %s31, 1
        %s219 = smul.addr %s218, 8
        %s220 = scalar_lea.vmem [#allocation2], %s219
        // Predicated region
        $region37: #{_fused_forward.1} parent=35 // pred_check
          %p221 = pneg %p44
        $region38: #{_fused_forward.1} parent=35 // pred_check_branch
          %223 = sbr.rel (%p221) target = $region40
        $region39: #{_fused_forward.1} parent=35 // pred_region
          %224 = dma.done %s217, 128
        $region40: #{_fused_forward.1} parent=35 // pred_fallthru
          _
        // Predicated region
        $region41: #{_fused_forward.1} parent=35 // pred_check
          %p225 = pneg %p65
        $region42: #{_fused_forward.1} parent=35 // pred_check_branch
          %227 = sbr.rel (%p225) target = $region44
        $region43: #{_fused_forward.1} parent=35 // pred_region
          %228 = dma.done [#allocation6], 384
        $region44: #{_fused_forward.1} parent=35 // pred_fallthru
          _
        // Predicated region
        $region45: #{_fused_forward.1} parent=35 // pred_check
          %p229 = pneg %p86
        $region46: #{_fused_forward.1} parent=35 // pred_check_branch
          %231 = sbr.rel (%p229) target = $region48
        $region47: #{_fused_forward.1} parent=35 // pred_region
          %232 = dma.done [#allocation6], 2048
        $region48: #{_fused_forward.1} parent=35 // pred_fallthru
          _
        // Predicated region
        $region49: #{_fused_forward.1} parent=35 // pred_check
          %p233 = pneg %p107
        $region50: #{_fused_forward.1} parent=35 // pred_check_branch
          %235 = sbr.rel (%p233) target = $region52
        $region51: #{_fused_forward.1} parent=35 // pred_region
          %236 = dma.done [#allocation9], 2048
        $region52: #{_fused_forward.1} parent=35 // pred_fallthru
          _
        %s237 = sand.u32 %s31, 1
        %s238 = scalar_lea.sflag [#allocation3], %s237
        %s239 = sand.u32 %s31, 1
        %s240 = smul.addr %s239, 8
        %s241 = scalar_lea.vmem [#allocation2], %s240
        %p242 = pneg %p44
        %p243 = pneg %p41
        %p244 = pneg %p65
        %p245 = pneg %p62
        %p246 = pneg %p86
        %p247 = pneg %p83
        %p248 = pneg %p107
        %p249 = pneg %p104
        %p250 = pneg %p133
        %p251 = pneg %p130
        %s252 = sand.u32 %s120, 1
        %s253 = scalar_lea.sflag [#allocation4], %s252
        %s254 = sand.u32 %s120, 1
        %s255 = smul.addr %s254, 8
        %s256 = scalar_lea.vmem [#allocation10], %s255
        %v257 = vld [vmem:[%s220] sm:$0xff]
        %v258 = vld [vmem:[#allocation5] sm:$0xff]
        %v259 = vld [vmem:[#allocation5 + $0x8] sm:$0xff]
        %v260 = vld [vmem:[#allocation5 + $0x10] sm:$0xff]
        %vm261 = vcmask 195584
        %v263 = vsel %vm261, %v257, 0
        %265 = vmatprep.subr.mxu0 0.0
        %266 = vmatpush1.msra.mxu0 %v258
        %267 = vmatprep.subr.mxu0 0.0
        %268 = vmatpush1.msra.mxu0 %v259
        %269 = vmatprep.subr.mxu0 0.0
        %270 = vmatpush1.msra.mxu0 %v260
        %271 = vmatprep.subr.mxu0 0.0
        %272 = vmatpush1.msra.mxu0 0.0
        %273 = vmatprep.subr.mxu0 0.0
        %274 = vmatpush1.msra.mxu0 0.0
        %275 = vmatprep.subr.mxu0 0.0
        %276 = vmatpush1.msra.mxu0 0.0
        %277 = vmatprep.subr.mxu0 0.0
        %278 = vmatpush1.msra.mxu0 0.0
        %279 = vmatprep.subr.mxu0 0.0
        %280 = vmatpush1.msra.mxu0 0.0
        %281 = vmatprep.subr.mxu0 0.0
        %282 = vmatpush1.msra.mxu0 0.0
        %283 = vmatprep.subr.mxu0 0.0
        %284 = vmatpush1.msra.mxu0 0.0
        %285 = vmatprep.subr.mxu0 0.0
        %286 = vmatpush1.msra.mxu0 0.0
        %287 = vmatprep.subr.mxu0 0.0
        %288 = vmatpush1.msra.mxu0 0.0
        %289 = vmatprep.subr.mxu0 0.0
        %290 = vmatpush1.msra.mxu0 0.0
        %291 = vmatprep.subr.mxu0 0.0
        %292 = vmatpush1.msra.mxu0 0.0
        %293 = vmatprep.subr.mxu0 0.0
        %294 = vmatpush1.msra.mxu0 0.0
        %295 = vmatprep.subr.mxu0 0.0
        %296 = vmatpush1.msra.mxu0 0.0
        %297 = vmatprep.subr.mxu0 0.0
        %298 = vmatpush1.msra.mxu0 0.0
        %299 = vmatprep.subr.mxu0 0.0
        %300 = vmatpush1.msra.mxu0 0.0
        %301 = vmatprep.subr.mxu0 0.0
        %302 = vmatpush1.msra.mxu0 0.0
        %303 = vmatprep.subr.mxu0 0.0
        %304 = vmatpush1.msra.mxu0 0.0
        %305 = vmatprep.subr.mxu0 0.0
        %306 = vmatpush1.msra.mxu0 0.0
        %307 = vmatprep.subr.mxu0 0.0
        %308 = vmatpush1.msra.mxu0 0.0
        %309 = vmatprep.subr.mxu0 0.0
        %310 = vmatpush1.msra.mxu0 0.0
        %311 = vmatprep.subr.mxu0 0.0
        %312 = vmatpush1.msra.mxu0 0.0
        %313 = vmatprep.subr.mxu0 0.0
        %314 = vmatpush1.msra.mxu0 0.0
        %315 = vmatprep.subr.mxu0 0.0
        %316 = vmatpush1.msra.mxu0 0.0
        %317 = vmatprep.subr.mxu0 0.0
        %318 = vmatpush1.msra.mxu0 0.0
        %319 = vmatprep.subr.mxu0 0.0
        %320 = vmatpush1.msra.mxu0 0.0
        %321 = vmatprep.subr.mxu0 0.0
        %322 = vmatpush1.msra.mxu0 0.0
        %323 = vmatprep.subr.mxu0 0.0
        %324 = vmatpush1.msra.mxu0 0.0
        %325 = vmatprep.subr.mxu0 0.0
        %326 = vmatpush1.msra.mxu0 0.0
        %327 = vmatprep.subr.mxu0 0.0
        %328 = vmatpush1.msra.mxu0 0.0
        %329 = vmatprep.mubr.f32.mxu0 0.0
        %330 = vmatmul.mubr.f32.gmra.mrb[0].mxu0 %v263
        %v331 = vpop.f32.mrb[0].mxu0
        %v332 = vadd.f32 0.0, %v331
        %v333 = vpop.f32.mrb[0].mxu0
        %334 = vdwg.mxu0
        %v335 = vmax.f32 %v332, 0.0
        %v336 = vld [vmem:[#allocation7] sm:$0xff]
        %v337 = vld [vmem:[#allocation7 + $0x8] sm:$0xff]
        %v338 = vld [vmem:[#allocation7 + $0x10] sm:$0xff]
        %v339 = vld [vmem:[#allocation7 + $0x18] sm:$0xff]
        %v340 = vld [vmem:[#allocation7 + $0x20] sm:$0xff]
        %v341 = vld [vmem:[#allocation7 + $0x28] sm:$0xff]
        %v342 = vld [vmem:[#allocation7 + $0x30] sm:$0xff]
        %v343 = vld [vmem:[#allocation7 + $0x38] sm:$0xff]
        %v344 = vld [vmem:[#allocation7 + $0x40] sm:$0xff]
        %v345 = vld [vmem:[#allocation7 + $0x48] sm:$0xff]
        %v346 = vld [vmem:[#allocation7 + $0x50] sm:$0xff]
        %v347 = vld [vmem:[#allocation7 + $0x58] sm:$0xff]
        %v348 = vld [vmem:[#allocation7 + $0x60] sm:$0xff]
        %v349 = vld [vmem:[#allocation7 + $0x68] sm:$0xff]
        %v350 = vld [vmem:[#allocation7 + $0x70] sm:$0xff]
        %v351 = vld [vmem:[#allocation7 + $0x78] sm:$0xff]
        %352 = vmatprep.subr.mxu0 0.0
        %353 = vmatpush1.msra.mxu0 %v336
        %354 = vmatprep.subr.mxu0 0.0
        %355 = vmatpush1.msra.mxu0 %v337
        %356 = vmatprep.subr.mxu0 0.0
        %357 = vmatpush1.msra.mxu0 %v338
        %358 = vmatprep.subr.mxu0 0.0
        %359 = vmatpush1.msra.mxu0 %v339
        %360 = vmatprep.subr.mxu0 0.0
        %361 = vmatpush1.msra.mxu0 %v340
        %362 = vmatprep.subr.mxu0 0.0
        %363 = vmatpush1.msra.mxu0 %v341
        %364 = vmatprep.subr.mxu0 0.0
        %365 = vmatpush1.msra.mxu0 %v342
        %366 = vmatprep.subr.mxu0 0.0
        %367 = vmatpush1.msra.mxu0 %v343
        %368 = vmatprep.subr.mxu0 0.0
        %369 = vmatpush1.msra.mxu0 %v344
        %370 = vmatprep.subr.mxu0 0.0
        %371 = vmatpush1.msra.mxu0 %v345
        %372 = vmatprep.subr.mxu0 0.0
        %373 = vmatpush1.msra.mxu0 %v346
        %374 = vmatprep.subr.mxu0 0.0
        %375 = vmatpush1.msra.mxu0 %v347
        %376 = vmatprep.subr.mxu0 0.0
        %377 = vmatpush1.msra.mxu0 %v348
        %378 = vmatprep.subr.mxu0 0.0
        %379 = vmatpush1.msra.mxu0 %v349
        %380 = vmatprep.subr.mxu0 0.0
        %381 = vmatpush1.msra.mxu0 %v350
        %382 = vmatprep.subr.mxu0 0.0
        %383 = vmatpush1.msra.mxu0 %v351
        %384 = vmatprep.subr.mxu0 0.0
        %385 = vmatpush1.msra.mxu0 0.0
        %386 = vmatprep.subr.mxu0 0.0
        %387 = vmatpush1.msra.mxu0 0.0
        %388 = vmatprep.subr.mxu0 0.0
        %389 = vmatpush1.msra.mxu0 0.0
        %390 = vmatprep.subr.mxu0 0.0
        %391 = vmatpush1.msra.mxu0 0.0
        %392 = vmatprep.subr.mxu0 0.0
        %393 = vmatpush1.msra.mxu0 0.0
        %394 = vmatprep.subr.mxu0 0.0
        %395 = vmatpush1.msra.mxu0 0.0
        %396 = vmatprep.subr.mxu0 0.0
        %397 = vmatpush1.msra.mxu0 0.0
        %398 = vmatprep.subr.mxu0 0.0
        %399 = vmatpush1.msra.mxu0 0.0
        %400 = vmatprep.subr.mxu0 0.0
        %401 = vmatpush1.msra.mxu0 0.0
        %402 = vmatprep.subr.mxu0 0.0
        %403 = vmatpush1.msra.mxu0 0.0
        %404 = vmatprep.subr.mxu0 0.0
        %405 = vmatpush1.msra.mxu0 0.0
        %406 = vmatprep.subr.mxu0 0.0
        %407 = vmatpush1.msra.mxu0 0.0
        %408 = vmatprep.subr.mxu0 0.0
        %409 = vmatpush1.msra.mxu0 0.0
        %410 = vmatprep.subr.mxu0 0.0
        %411 = vmatpush1.msra.mxu0 0.0
        %412 = vmatprep.subr.mxu0 0.0
        %413 = vmatpush1.msra.mxu0 0.0
        %414 = vmatprep.subr.mxu0 0.0
        %415 = vmatpush1.msra.mxu0 0.0
        %416 = vmatprep.mubr.f32.mxu0 0.0
        %417 = vmatmul.mubr.f32.gmra.mrb[0].mxu0 %v335
        %v418 = vpop.f32.mrb[0].mxu0
        %v419 = vadd.f32 0.0, %v418
        %v420 = vpop.f32.mrb[0].mxu0
        %421 = vdwg.mxu0
        %v422 = vmax.f32 %v419, 0.0
        %v423 = vld [vmem:[#allocation8] sm:$0xff]
        %v424 = vld [vmem:[#allocation8 + $0x8] sm:$0xff]
        %v425 = vld [vmem:[#allocation8 + $0x10] sm:$0xff]
        %v426 = vld [vmem:[#allocation8 + $0x18] sm:$0xff]
        %v427 = vld [vmem:[#allocation8 + $0x20] sm:$0xff]
        %v428 = vld [vmem:[#allocation8 + $0x28] sm:$0xff]
        %v429 = vld [vmem:[#allocation8 + $0x30] sm:$0xff]
        %v430 = vld [vmem:[#allocation8 + $0x38] sm:$0xff]
        %v431 = vld [vmem:[#allocation8 + $0x40] sm:$0xff]
        %v432 = vld [vmem:[#allocation8 + $0x48] sm:$0xff]
        %v433 = vld [vmem:[#allocation8 + $0x50] sm:$0xff]
        %v434 = vld [vmem:[#allocation8 + $0x58] sm:$0xff]
        %v435 = vld [vmem:[#allocation8 + $0x60] sm:$0xff]
        %v436 = vld [vmem:[#allocation8 + $0x68] sm:$0xff]
        %v437 = vld [vmem:[#allocation8 + $0x70] sm:$0xff]
        %v438 = vld [vmem:[#allocation8 + $0x78] sm:$0xff]
        %439 = vmatprep.subr.mxu0 0.0
        %440 = vmatpush1.msra.mxu0 %v423
        %441 = vmatprep.subr.mxu0 0.0
        %442 = vmatpush1.msra.mxu0 %v424
        %443 = vmatprep.subr.mxu0 0.0
        %444 = vmatpush1.msra.mxu0 %v425
        %445 = vmatprep.subr.mxu0 0.0
        %446 = vmatpush1.msra.mxu0 %v426
        %447 = vmatprep.subr.mxu0 0.0
        %448 = vmatpush1.msra.mxu0 %v427
        %449 = vmatprep.subr.mxu0 0.0
        %450 = vmatpush1.msra.mxu0 %v428
        %451 = vmatprep.subr.mxu0 0.0
        %452 = vmatpush1.msra.mxu0 %v429
        %453 = vmatprep.subr.mxu0 0.0
        %454 = vmatpush1.msra.mxu0 %v430
        %455 = vmatprep.subr.mxu0 0.0
        %456 = vmatpush1.msra.mxu0 %v431
        %457 = vmatprep.subr.mxu0 0.0
        %458 = vmatpush1.msra.mxu0 %v432
        %459 = vmatprep.subr.mxu0 0.0
        %460 = vmatpush1.msra.mxu0 %v433
        %461 = vmatprep.subr.mxu0 0.0
        %462 = vmatpush1.msra.mxu0 %v434
        %463 = vmatprep.subr.mxu0 0.0
        %464 = vmatpush1.msra.mxu0 %v435
        %465 = vmatprep.subr.mxu0 0.0
        %466 = vmatpush1.msra.mxu0 %v436
        %467 = vmatprep.subr.mxu0 0.0
        %468 = vmatpush1.msra.mxu0 %v437
        %469 = vmatprep.subr.mxu0 0.0
        %470 = vmatpush1.msra.mxu0 %v438
        %471 = vmatprep.subr.mxu0 0.0
        %472 = vmatpush1.msra.mxu0 0.0
        %473 = vmatprep.subr.mxu0 0.0
        %474 = vmatpush1.msra.mxu0 0.0
        %475 = vmatprep.subr.mxu0 0.0
        %476 = vmatpush1.msra.mxu0 0.0
        %477 = vmatprep.subr.mxu0 0.0
        %478 = vmatpush1.msra.mxu0 0.0
        %479 = vmatprep.subr.mxu0 0.0
        %480 = vmatpush1.msra.mxu0 0.0
        %481 = vmatprep.subr.mxu0 0.0
        %482 = vmatpush1.msra.mxu0 0.0
        %483 = vmatprep.subr.mxu0 0.0
        %484 = vmatpush1.msra.mxu0 0.0
        %485 = vmatprep.subr.mxu0 0.0
        %486 = vmatpush1.msra.mxu0 0.0
        %487 = vmatprep.subr.mxu0 0.0
        %488 = vmatpush1.msra.mxu0 0.0
        %489 = vmatprep.subr.mxu0 0.0
        %490 = vmatpush1.msra.mxu0 0.0
        %491 = vmatprep.subr.mxu0 0.0
        %492 = vmatpush1.msra.mxu0 0.0
        %493 = vmatprep.subr.mxu0 0.0
        %494 = vmatpush1.msra.mxu0 0.0
        %495 = vmatprep.subr.mxu0 0.0
        %496 = vmatpush1.msra.mxu0 0.0
        %497 = vmatprep.subr.mxu0 0.0
        %498 = vmatpush1.msra.mxu0 0.0
        %499 = vmatprep.subr.mxu0 0.0
        %500 = vmatpush1.msra.mxu0 0.0
        %501 = vmatprep.subr.mxu0 0.0
        %502 = vmatpush1.msra.mxu0 0.0
        %503 = vmatprep.mubr.f32.mxu0 0.0
        %504 = vmatmul.mubr.f32.gmra.mrb[0].mxu0 %v422
        %v505 = vpop.f32.mrb[0].mxu0
        %v506 = vadd.f32 0.0, %v505
        %v507 = vpop.f32.mrb[0].mxu0
        %508 = vdwg.mxu0
        %509 = vst [vmem:[%s256] sm:$0xff] %v506
        %s510 = sand.u32 %s120, 1
        %s511 = scalar_lea.sflag [#allocation4], %s510
        %s512 = sand.u32 %s120, 1
        %s513 = smul.addr %s512, 8
        %s514 = scalar_lea.vmem [#allocation10], %s513
        // Predicated region
        $region53: #{_fused_forward.1} parent=35 // pred_check
          %p515 = pneg %p130
        $region54: #{_fused_forward.1} parent=35 // pred_check_branch
          %517 = sbr.rel (%p515) target = $region56
        $region55: #{_fused_forward.1} parent=35 // pred_region
          %s519 = ssub.s32 128, 128
          %520 = vsyncadd %s511, %s519
          %s521 = smul.addr %s23, 128
          %s522 = scalar_lea.hbm %s4, %s521
          %s524 = sshll.u32 %s514, 4
          %s525 = int_to_ptr.vmem [resolvable:$true] %s524
          %527 = dma.vmem_to_hbm [thread:$0]  %s525, 128, %s522, %s511
        $region56: #{_fused_forward.1} parent=35 // pred_fallthru
          _
      $region36: #{_fused_forward.1} parent=5 // pred_fallthru
        _
      %p528 = scmp.le.s32.totalorder 2, %s18
      // Predicated region
      $region57: #{_fused_forward.1} parent=5 // pred_check
        %p529 = pneg %p528
      $region58: #{_fused_forward.1} parent=5 // pred_check_branch
        %531 = sbr.rel (%p529) target = $region60
      $region59: #{_fused_forward.1} parent=5 // pred_region
        %s532 = ssub.s32 %s18, 2
        // Predicated region
        $region61: #{_fused_forward.1} parent=59 // pred_check
          %p533 = pneg %p136
        $region62: #{_fused_forward.1} parent=59 // pred_check_branch
          %535 = sbr.rel (%p533) target = $region64
        $region63: #{_fused_forward.1} parent=59 // pred_region
          %s536 = sand.u32 %s121, 1
          %s537 = scalar_lea.sflag [#allocation4], %s536
          %s538 = sand.u32 %s121, 1
          %s539 = smul.addr %s538, 8
          %s540 = scalar_lea.vmem [#allocation10], %s539
          %541 = dma.done %s537, 128
        $region64: #{_fused_forward.1} parent=59 // pred_fallthru
          _
      $region60: #{_fused_forward.1} parent=5 // pred_fallthru
        _
    $region6: #{_fused_forward.1} parent=1 // loop_footer
      %s22 = sadd.s32 1, %s18
    $region7: #{_fused_forward.1} parent=1 // loop_footer_branch
      %17 = sbr.rel target = $region3
    $region8: #{_fused_forward.1} parent=1 // loop_exit
      _
    %542 = vsyncpa [#allocation3], 1
    %s543 = scalar_lea.sflag [#allocation3], 1
    %544 = vsyncpa %s543, 1
    %545 = vsyncpa [#allocation6], 1
    %546 = vsyncpa [#allocation9], 1
    %547 = vsyncpa [#allocation4], 1
    %s548 = scalar_lea.sflag [#allocation4], 1
    %549 = vsyncpa %s548, 1

</llo_original>
